<compile_context>
chip_gen: v7x
topology: tpu7x:2x2x1
jax: 0.10.0
libtpu: 0.0.40
codegen_flags: <defaults>
</compile_context>

<pallas_src>
import functools

import jax
import jax.numpy as jnp
from jax.experimental import pallas as pl
from jax.experimental.pallas import tpu as pltpu


def _round_up(x, m):
    return ((x + m - 1) // m) * m


def _cdiv(a, b):
    return -(-a // b)


def _balanced_tile(dim, max_tile, align):
    """Split `dim` into equal-ish tiles <= ~max_tile, each a multiple of `align`."""
    if dim <= max_tile:
        return _round_up(dim, align)
    nt = _cdiv(dim, max_tile)
    return _round_up(_cdiv(dim, nt), align)


def _vmem_budget_bytes():
    """Usable scoped-VMEM budget with headroom, generation-aware."""
    cap = 64 * 1024 * 1024
    try:
        info = pltpu.get_tpu_info()
        cap = int(getattr(info, "vmem_capacity_bytes", cap))
    except Exception:
        pass
    if cap <= 64 * 1024 * 1024:
        # v7x: 64 MiB physical VMEM -> leave ~12 MiB for compiler scratch / semaphores.
        return cap - 12 * 1024 * 1024
    # v5e/v6e: 128 MiB physical -> allow up to ~100 MiB.
    return min(cap - 24 * 1024 * 1024, 100 * 1024 * 1024)


# ----------------------------------------------------------------------------- kernels


def _linear_relu_resident_kernel(x_ref, w_ref, b_ref, o_ref):
    # x_ref: (tm, Kp)  w_ref: (Kp, Np) [VMEM-resident]  b_ref: (1, Np)  o_ref: (tm, Np)
    acc = jnp.dot(x_ref[...], w_ref[...], preferred_element_type=jnp.float32)
    o_ref[...] = jnp.maximum(acc + b_ref[...], 0.0).astype(o_ref.dtype)


def _linear_relu_stream_f32out_kernel(x_ref, w_ref, b_ref, o_ref):
    # f32 output block is resident across k -> accumulate directly into it (no scratch).
    k = pl.program_id(2)

    @pl.when(k == 0)
    def _():
        o_ref[...] = jnp.zeros_like(o_ref)

    o_ref[...] += jnp.dot(x_ref[...], w_ref[...], preferred_element_type=jnp.float32)

    @pl.when(k == pl.num_programs(2) - 1)
    def _():
        o_ref[...] = jnp.maximum(o_ref[...] + b_ref[...], 0.0)


def _linear_relu_stream_acc_kernel(x_ref, w_ref, b_ref, o_ref, acc_ref):
    # Non-f32 output: keep an f32 VMEM accumulator, cast once in the epilogue.
    k = pl.program_id(2)

    @pl.when(k == 0)
    def _():
        acc_ref[...] = jnp.zeros_like(acc_ref)

    acc_ref[...] += jnp.dot(x_ref[...], w_ref[...], preferred_element_type=jnp.float32)

    @pl.when(k == pl.num_programs(2) - 1)
    def _():
        o_ref[...] = jnp.maximum(acc_ref[...] + b_ref[...], 0.0).astype(o_ref.dtype)


# ----------------------------------------------------------------------------- wrapper


@functools.partial(
    jax.jit, static_argnames=("tm", "tn", "tk", "use_bf16_operands")
)
def contrastive_model_forward(x, w_t, b, *, tm=512, tn=512, tk=1024,
                              use_bf16_operands=False):
    """ReLU(x @ w_t + b).

    x:   (B, D_in)
    w_t: (D_in, D_out)   (torch weight transposed)
    b:   (D_out,)
    returns (B, D_out) in x's original dtype (accumulation always f32).
    """
    B, D_in = x.shape
    D_out = w_t.shape[1]
    out_dtype = x.dtype

    if use_bf16_operands:
        x = x.astype(jnp.bfloat16)
        w_t = w_t.astype(jnp.bfloat16)

    op_item = jnp.dtype(x.dtype).itemsize
    out_item = jnp.dtype(out_dtype).itemsize
    sub_align = 16 if op_item == 2 else 8  # bf16 packs 16 sublanes per vreg

    budget = _vmem_budget_bytes()

    # Padded feature dims (lane axes must be multiples of 128).
    Kp = _round_up(D_in, 128)
    Np = _round_up(D_out, 128)

    # Balanced row tiling.
    tm_e = _balanced_tile(B, tm, sub_align)
    # Megacore (v7x): split a single row block in two when it costs at most one extra
    # alignment's worth of padding, so both TensorCores get work.
    if _cdiv(_round_up(B, tm_e), tm_e) == 1 and B >= 4 * sub_align:
        tm_e = _round_up(_cdiv(B, 2), sub_align)
    Bp = _round_up(B, tm_e)

    bias_f32 = b.astype(jnp.float32)

    # --------------------------------------------------------------- resident-weight path
    resident_bytes = (
        2 * Kp * Np * op_item      # weight (conservatively counted double-buffered)
        + 2 * tm_e * Kp * op_item  # x row blocks (double-buffered)
        + 2 * Np * 4               # bias
        + 2 * tm_e * Np * out_item # output row blocks (double-buffered)
    )

    if resident_bytes <= budget:
        xp = x if (Bp == B and Kp == D_in) else jnp.pad(x, ((0, Bp - B), (0, Kp - D_in)))
        wp = (w_t if (Kp == D_in and Np == D_out)
              else jnp.pad(w_t, ((0, Kp - D_in), (0, Np - D_out))))
        bp = (bias_f32 if Np == D_out else jnp.pad(bias_f32, (0, Np - D_out))).reshape(1, Np)

        grid = (Bp // tm_e,)
        vmem_limit = min(budget, max(2 * resident_bytes, 32 * 1024 * 1024))
        cost = pl.CostEstimate(
            flops=2 * Bp * Kp * Np,
            transcendentals=0,
            bytes_accessed=(Bp * Kp * op_item + Kp * Np * op_item
                            + Np * 4 + Bp * Np * out_item),
        )

        out = pl.pallas_call(
            _linear_relu_resident_kernel,
            out_shape=jax.ShapeDtypeStruct((Bp, Np), out_dtype),
            grid_spec=pltpu.PrefetchScalarGridSpec(
                num_scalar_prefetch=0,
                grid=grid,
                in_specs=[
                    pl.BlockSpec((tm_e, Kp), lambda i: (i, 0)),  # x row block
                    pl.BlockSpec((Kp, Np), lambda i: (0, 0)),    # weight: constant -> resident
                    pl.BlockSpec((1, Np), lambda i: (0, 0)),     # bias:   constant -> resident
                ],
                out_specs=pl.BlockSpec((tm_e, Np), lambda i: (i, 0)),
            ),
            compiler_params=pltpu.CompilerParams(
                dimension_semantics=("parallel",),
                vmem_limit_bytes=vmem_limit,
            ),
            cost_estimate=cost,
        )(xp, wp, bp)

        return out[:B, :D_out]

    # --------------------------------------------------------------- streaming fallback
    out_is_f32 = jnp.dtype(out_dtype) == jnp.dtype(jnp.float32)
    tn_e = _balanced_tile(D_out, tn, 128)
    tk_e = _balanced_tile(D_in, tk, 128)

    def stream_bytes(tm_, tn_, tk_):
        acc_bytes = 0 if out_is_f32 else tm_ * tn_ * 4
        return (2 * tm_ * tk_ * op_item + 2 * tk_ * tn_ * op_item
                + 2 * tn_ * 4 + 2 * tm_ * tn_ * out_item + acc_bytes)

    # Shrink tiles (K first, then N, then M) until the working set fits the budget.
    while stream_bytes(tm_e, tn_e, tk_e) > budget and tk_e > 128:
        tk_e = _round_up(tk_e // 2, 128)
    while stream_bytes(tm_e, tn_e, tk_e) > budget and tn_e > 128:
        tn_e = _round_up(tn_e // 2, 128)
    while stream_bytes(tm_e, tn_e, tk_e) > budget and tm_e > sub_align:
        tm_e = _round_up(tm_e // 2, sub_align)

    Bp = _round_up(B, tm_e)
    Np = _round_up(D_out, tn_e)
    Kp = _round_up(D_in, tk_e)

    xp = x if (Bp == B and Kp == D_in) else jnp.pad(x, ((0, Bp - B), (0, Kp - D_in)))
    wp = (w_t if (Kp == D_in and Np == D_out)
          else jnp.pad(w_t, ((0, Kp - D_in), (0, Np - D_out))))
    bp = (bias_f32 if Np == D_out else jnp.pad(bias_f32, (0, Np - D_out))).reshape(1, Np)

    grid = (Bp // tm_e, Np // tn_e, Kp // tk_e)
    used = stream_bytes(tm_e, tn_e, tk_e)
    vmem_limit = min(budget, max(2 * used, 32 * 1024 * 1024))
    cost = pl.CostEstimate(
        flops=2 * Bp * Kp * Np,
        transcendentals=0,
        bytes_accessed=((Np // tn_e) * Bp * Kp * op_item       # x re-read per N block
                        + (Bp // tm_e) * Kp * Np * op_item     # weight re-read per row block
                        + Np * 4 + Bp * Np * out_item),
    )

    kernel = (_linear_relu_stream_f32out_kernel if out_is_f32
              else _linear_relu_stream_acc_kernel)
    scratch = [] if out_is_f32 else [pltpu.VMEM((tm_e, tn_e), jnp.float32)]

    out = pl.pallas_call(
        kernel,
        out_shape=jax.ShapeDtypeStruct((Bp, Np), out_dtype),
        grid_spec=pltpu.PrefetchScalarGridSpec(
            num_scalar_prefetch=0,
            grid=grid,
            in_specs=[
                pl.BlockSpec((tm_e, tk_e), lambda i, j, k: (i, k)),
                pl.BlockSpec((tk_e, tn_e), lambda i, j, k: (k, j)),
                pl.BlockSpec((1, tn_e), lambda i, j, k: (0, j)),
            ],
            out_specs=pl.BlockSpec((tm_e, tn_e), lambda i, j, k: (i, j)),
            scratch_shapes=scratch,
        ),
        compiler_params=pltpu.CompilerParams(
            dimension_semantics=("parallel", "parallel", "arbitrary"),
            vmem_limit_bytes=vmem_limit,
        ),
        cost_estimate=cost,
    )(xp, wp, bp)

    return out[:B, :D_out]


def init_params(key, input_dim, embedding_dim):
    # Deterministic init mimicking nn.Linear's uniform(-1/sqrt(fan_in), 1/sqrt(fan_in)).
    kw, kb = jax.random.split(key)
    bound = 1.0 / (input_dim ** 0.5)
    w = jax.random.uniform(kw, (embedding_dim, input_dim), jnp.float32, -bound, bound)
    b = jax.random.uniform(kb, (embedding_dim,), jnp.float32, -bound, bound)
    return w, b


if __name__ == "__main__":
    input_dim = 32
    embedding_dim = 64
    batch = 8

    key = jax.random.PRNGKey(0)
    kx, kp = jax.random.split(key)
    x = jax.random.normal(kx, (batch, input_dim), jnp.float32)
    w, b = init_params(kp, input_dim, embedding_dim)  # w: (embedding_dim, input_dim) like torch

    # Pass the transposed weight so the kernel does x @ W^T via a plain matmul.
    y = contrastive_model_forward(x, w.T, b)
    y = jax.block_until_ready(y)

    y_ref = jnp.maximum(x @ w.T + b, 0.0)
    assert y.shape == (batch, embedding_dim)
    assert jnp.allclose(y, y_ref, atol=1e-5, rtol=1e-5)

    # Larger, non-tile-multiple shape: exercises padding, balanced tiling and the
    # 2-row-block grid (both v7x TensorCores active), still weight-resident.
    Bb, Di, Do = 300, 200, 160
    xb = jax.random.normal(jax.random.PRNGKey(1), (Bb, Di), jnp.float32)
    wb, bb = init_params(jax.random.PRNGKey(2), Di, Do)
    yb = jax.block_until_ready(contrastive_model_forward(xb, wb.T, bb))
    yb_ref = jnp.maximum(xb @ wb.T + bb, 0.0)
    assert jnp.allclose(yb, yb_ref, atol=1e-4, rtol=1e-4)

    print("KERNEL_OK")
</pallas_src>

<mosaic_0001>
module attributes {stable_mosaic.version = 11 : i64} {
  func.func @_linear_relu_resident_kernel(%arg0: i32, %arg1: memref<8x128xf32, #tpu.memory_space<vmem>>, %arg2: memref<128x128xf32, #tpu.memory_space<vmem>>, %arg3: memref<1x128xf32, #tpu.memory_space<vmem>>, %arg4: memref<8x128xf32, #tpu.memory_space<vmem>>) attributes {dimension_semantics = [#tpu.dimension_semantics<parallel>], iteration_bounds = array<i64: 1>, scalar_prefetch = 0 : i64, scratch_operands = 0 : i64, tpu.core_type = #tpu.core_type<tc>, window_params = [{transform_indices = @transform_0, window_bounds = array<i64: 8, 128>}, {pipeline_mode = #tpu.pipeline_mode<synchronous>, transform_indices = @transform_1, window_bounds = array<i64: 128, 128>}, {pipeline_mode = #tpu.pipeline_mode<synchronous>, transform_indices = @transform_2, window_bounds = array<i64: 1, 128>}, {transform_indices = @transform_3, window_bounds = array<i64: 8, 128>}]} {
    %c0 = arith.constant 0 : index
    %c0_0 = arith.constant 0 : index
    %0 = vector.load %arg1[%c0, %c0_0] : memref<8x128xf32, #tpu.memory_space<vmem>>, vector<8x128xf32>
    %c0_1 = arith.constant 0 : index
    %c0_2 = arith.constant 0 : index
    %1 = vector.load %arg2[%c0_1, %c0_2] : memref<128x128xf32, #tpu.memory_space<vmem>>, vector<128x128xf32>
    %cst = arith.constant dense<0.000000e+00> : vector<8x128xf32>
    %2 = tpu.matmul %0, %1, %cst {dimension_numbers = #tpu.dot_dimension_numbers<[1], [0], [0], [1], [0, 0, 1, 1], [], []>} : vector<8x128xf32>, vector<128x128xf32>, vector<8x128xf32> -> vector<8x128xf32>
    %c0_3 = arith.constant 0 : index
    %c0_4 = arith.constant 0 : index
    %3 = vector.load %arg3[%c0_3, %c0_4] : memref<1x128xf32, #tpu.memory_space<vmem>>, vector<1x128xf32>
    %4 = vector.broadcast %3 : vector<1x128xf32> to vector<8x128xf32>
    %5 = arith.addf %2, %4 : vector<8x128xf32>
    %cst_5 = arith.constant 0.000000e+00 : f32
    %6 = vector.broadcast %cst_5 : f32 to vector<8x128xf32>
    %7 = arith.maximumf %5, %6 : vector<8x128xf32>
    %c0_6 = arith.constant 0 : index
    %c0_7 = arith.constant 0 : index
    %8 = vector.load %arg4[%c0_6, %c0_7] : memref<8x128xf32, #tpu.memory_space<vmem>>, vector<8x128xf32>
    tpu.vector_store %arg4[%c0_6, %c0_7], %7 {strides = array<i32>} : memref<8x128xf32, #tpu.memory_space<vmem>>, vector<8x128xf32>,
    return
  }
  func.func @transform_0(%arg0: i32) -> (i32, i32) {
    %c0_i32 = arith.constant 0 : i32
    %c0_i32_0 = arith.constant 0 : i32
    return %arg0, %c0_i32 : i32, i32
  }
  func.func @transform_1(%arg0: i32) -> (i32, i32) {
    %c0_i32 = arith.constant 0 : i32
    %c0_i32_0 = arith.constant 0 : i32
    %c0_i32_1 = arith.constant 0 : i32
    return %c0_i32, %c0_i32_0 : i32, i32
  }
  func.func @transform_2(%arg0: i32) -> (i32, i32) {
    %c0_i32 = arith.constant 0 : i32
    %c0_i32_0 = arith.constant 0 : i32
    %c0_i32_1 = arith.constant 0 : i32
    return %c0_i32, %c0_i32_0 : i32, i32
  }
  func.func @transform_3(%arg0: i32) -> (i32, i32) {
    %c0_i32 = arith.constant 0 : i32
    %c0_i32_0 = arith.constant 0 : i32
    return %arg0, %c0_i32 : i32, i32
  }
}

</mosaic_0001>

<llo_original>
// kernel: contrastive_model_forward.1
$region0: #{contrastive_model_forward.1}
  #allocation0 [shape = 'u32[]', space=smem, size = 0x4, offset = 0x4, fixed_abs, tag = 'smem constant byte address 0x4 - core index']
  #allocation1 [shape = 'u32[144,128]{1,0:T(1,128)}', space=vmem, size = 0x12000, scoped, tag = 'internal scratch']
  %s0 = inlined_call_operand.vmem [shape: f32[8,128], index: 0, kind: input, shape index: {}]
  %s1 = inlined_call_operand.vmem [shape: f32[128,128], index: 1, kind: input, shape index: {}]
  %s2 = inlined_call_operand.vmem [shape: f32[1,128], index: 2, kind: input, shape index: {}]
  %s3 = inlined_call_operand.hbm [shape: f32[8,128], index: 3, kind: output, shape index: {}]
  %s4 = sld [smem:[#allocation0]]
  $region22: #{contrastive_model_forward.1} parent=0
    _
  %s6 = ssub.s32 1, %s4
  %s7 = scalar_select 0, %s6, %s4
  $region1: #{contrastive_model_forward.1} parent=0
    #allocation2 [shape = 'u8[4096]{0}', space=vmem, size = 0x1000, scoped, tag = 'output window, operand 0, single buffered']
    #allocation3 [shape = 's32[1]{0}', space=sflag, size = 0x4, scoped, tag = 'scoped memory for contrastive_model_forward.1']
    %8 = vsyncpa [#allocation3], 0
    // Predicated region
    $region2: #{contrastive_model_forward.1} parent=1 // pred_check
      _
    $region3: #{contrastive_model_forward.1} parent=1 // pred_check_branch
      %10 = sbr.rel (0) target = $region5
    $region4: #{contrastive_model_forward.1} parent=1 // pred_region
      _
    $region5: #{contrastive_model_forward.1} parent=1 // pred_fallthru
      _
    // Predicated region
    $region6: #{contrastive_model_forward.1} parent=1 // pred_check
      _
    $region7: #{contrastive_model_forward.1} parent=1 // pred_check_branch
      %12 = sbr.rel (0) target = $region9
    $region8: #{contrastive_model_forward.1} parent=1 // pred_region
      _
    $region9: #{contrastive_model_forward.1} parent=1 // pred_fallthru
      _
    // Predicated region
    $region10: #{contrastive_model_forward.1} parent=1 // pred_check
      _
    $region11: #{contrastive_model_forward.1} parent=1 // pred_check_branch
      %14 = sbr.rel (0) target = $region13
    $region12: #{contrastive_model_forward.1} parent=1 // pred_region
      _
    $region13: #{contrastive_model_forward.1} parent=1 // pred_fallthru
      _
    %v15 = vld [vmem:[%s0] sm:$0xff]
    %v16 = vld [vmem:[%s1] sm:$0xff]
    %v17 = vld [vmem:[%s1 + $0x8] sm:$0xff]
    %v18 = vld [vmem:[%s1 + $0x10] sm:$0xff]
    %v19 = vld [vmem:[%s1 + $0x18] sm:$0xff]
    %v20 = vld [vmem:[%s1 + $0x20] sm:$0xff]
    %v21 = vld [vmem:[%s1 + $0x28] sm:$0xff]
    %v22 = vld [vmem:[%s1 + $0x30] sm:$0xff]
    %v23 = vld [vmem:[%s1 + $0x38] sm:$0xff]
    %v24 = vld [vmem:[%s1 + $0x40] sm:$0xff]
    %v25 = vld [vmem:[%s1 + $0x48] sm:$0xff]
    %v26 = vld [vmem:[%s1 + $0x50] sm:$0xff]
    %v27 = vld [vmem:[%s1 + $0x58] sm:$0xff]
    %v28 = vld [vmem:[%s1 + $0x60] sm:$0xff]
    %v29 = vld [vmem:[%s1 + $0x68] sm:$0xff]
    %v30 = vld [vmem:[%s1 + $0x70] sm:$0xff]
    %v31 = vld [vmem:[%s1 + $0x78] sm:$0xff]
    %v32 = vld [vmem:[%s2] sm:$0x1]
    %v34 = vlaneseq
    %v35 = vshrl.u32 %v34, 7
    %v36 = vsub.s32 0, %v35
    %v37 = vrot.slane %v32, %v36
    %39 = vmatprep.subr.mxu0 0.0
    %40 = vmatpush1.msra.mxu0 %v16
    %41 = vmatprep.subr.mxu0 0.0
    %42 = vmatpush1.msra.mxu0 %v17
    %43 = vmatprep.subr.mxu0 0.0
    %44 = vmatpush1.msra.mxu0 %v18
    %45 = vmatprep.subr.mxu0 0.0
    %46 = vmatpush1.msra.mxu0 %v19
    %47 = vmatprep.subr.mxu0 0.0
    %48 = vmatpush1.msra.mxu0 %v20
    %49 = vmatprep.subr.mxu0 0.0
    %50 = vmatpush1.msra.mxu0 %v21
    %51 = vmatprep.subr.mxu0 0.0
    %52 = vmatpush1.msra.mxu0 %v22
    %53 = vmatprep.subr.mxu0 0.0
    %54 = vmatpush1.msra.mxu0 %v23
    %55 = vmatprep.subr.mxu0 0.0
    %56 = vmatpush1.msra.mxu0 %v24
    %57 = vmatprep.subr.mxu0 0.0
    %58 = vmatpush1.msra.mxu0 %v25
    %59 = vmatprep.subr.mxu0 0.0
    %60 = vmatpush1.msra.mxu0 %v26
    %61 = vmatprep.subr.mxu0 0.0
    %62 = vmatpush1.msra.mxu0 %v27
    %63 = vmatprep.subr.mxu0 0.0
    %64 = vmatpush1.msra.mxu0 %v28
    %65 = vmatprep.subr.mxu0 0.0
    %66 = vmatpush1.msra.mxu0 %v29
    %67 = vmatprep.subr.mxu0 0.0
    %68 = vmatpush1.msra.mxu0 %v30
    %69 = vmatprep.subr.mxu0 0.0
    %70 = vmatpush1.msra.mxu0 %v31
    %71 = vmatprep.subr.mxu0 0.0
    %72 = vmatpush1.msra.mxu0 0.0
    %73 = vmatprep.subr.mxu0 0.0
    %74 = vmatpush1.msra.mxu0 0.0
    %75 = vmatprep.subr.mxu0 0.0
    %76 = vmatpush1.msra.mxu0 0.0
    %77 = vmatprep.subr.mxu0 0.0
    %78 = vmatpush1.msra.mxu0 0.0
    %79 = vmatprep.subr.mxu0 0.0
    %80 = vmatpush1.msra.mxu0 0.0
    %81 = vmatprep.subr.mxu0 0.0
    %82 = vmatpush1.msra.mxu0 0.0
    %83 = vmatprep.subr.mxu0 0.0
    %84 = vmatpush1.msra.mxu0 0.0
    %85 = vmatprep.subr.mxu0 0.0
    %86 = vmatpush1.msra.mxu0 0.0
    %87 = vmatprep.subr.mxu0 0.0
    %88 = vmatpush1.msra.mxu0 0.0
    %89 = vmatprep.subr.mxu0 0.0
    %90 = vmatpush1.msra.mxu0 0.0
    %91 = vmatprep.subr.mxu0 0.0
    %92 = vmatpush1.msra.mxu0 0.0
    %93 = vmatprep.subr.mxu0 0.0
    %94 = vmatpush1.msra.mxu0 0.0
    %95 = vmatprep.subr.mxu0 0.0
    %96 = vmatpush1.msra.mxu0 0.0
    %97 = vmatprep.subr.mxu0 0.0
    %98 = vmatpush1.msra.mxu0 0.0
    %99 = vmatprep.subr.mxu0 0.0
    %100 = vmatpush1.msra.mxu0 0.0
    %101 = vmatprep.subr.mxu0 0.0
    %102 = vmatpush1.msra.mxu0 0.0
    %103 = vmatprep.mubr.f32.mxu0 0.0
    %104 = vmatmul.mubr.f32.gmra.mrb[0].mxu0 %v15
    %v105 = vpop.f32.mrb[0].mxu0
    %v106 = vadd.f32 %v37, %v105
    %v107 = vpop.f32.mrb[0].mxu0
    %108 = vdwg.mxu0
    %v109 = vmax.f32 %v106, 0.0
    %110 = vst [vmem:[#allocation2] sm:$0xff] %v109
    // Predicated region
    $region14: #{contrastive_model_forward.1} parent=1 // pred_check
      _
    $region15: #{contrastive_model_forward.1} parent=1 // pred_check_branch
      %112 = sbr.rel (0) target = $region17
    $region16: #{contrastive_model_forward.1} parent=1 // pred_region
      %s114 = ssub.s32 128, 128
      %115 = vsyncadd [#allocation3], %s114
      %s117 = sshll.u32 [#allocation2], 4
      %s118 = int_to_ptr.vmem [resolvable:$true] %s117
      %120 = dma.vmem_to_hbm [thread:$0]  %s118, 128, %s3, [#allocation3]
    $region17: #{contrastive_model_forward.1} parent=1 // pred_fallthru
      _
    // Predicated region
    $region18: #{contrastive_model_forward.1} parent=1 // pred_check
      _
    $region19: #{contrastive_model_forward.1} parent=1 // pred_check_branch
      %122 = sbr.rel (0) target = $region21
    $region20: #{contrastive_model_forward.1} parent=1 // pred_region
      %123 = dma.done [#allocation3], 128
    $region21: #{contrastive_model_forward.1} parent=1 // pred_fallthru
      _
    %124 = vsyncpa [#allocation3], 1

</llo_original>
